<compile_context>
chip_gen: v5e
topology: v5e:2x2
jax: 0.10.0
libtpu: 0.0.40
codegen_flags: <defaults>
</compile_context>

<pallas_src>
import functools

import jax
import jax.numpy as jnp
from jax.experimental import pallas as pl
from jax.experimental.pallas import tpu as pltpu

# ---------------- tiny synthetic config ----------------
D_MODEL = 32
N_HEADS = 4
D_KV = 8            # per-head dim, N_HEADS * D_KV == inner dim
D_FF = 64
N_LAYERS = 2
VOCAB = 64
REL_BUCKETS = 8
REL_MAX_DIST = 16
LN_EPS = 1e-6
NEG_INF = -1e9

HDK = N_HEADS * D_KV            # 32
W_QKV = 3 * HDK                 # cols [0, 96)   : fused q|k|v projection
W_O = W_QKV + D_MODEL           # cols [96, 128) : attention out-proj (rows = H*DK)
W_FF = W_O + 2 * D_FF           # cols [128, 256): fused gate|linear FFN weight

# packed small-parameter row layout
ROW_LN1 = 0
ROW_LN2 = N_LAYERS
ROW_FLN = 2 * N_LAYERS
ROW_VHW = 2 * N_LAYERS + 1
ROW_VHB = 2 * N_LAYERS + 2
N_SMALL_ROWS = 2 * N_LAYERS + 3


# ---------------- fused Pallas kernel ----------------
def _rmsnorm(x, w):
    """T5 LayerNorm: x * rsqrt(mean(x^2) + eps) * w over last dim (f32)."""
    var = jnp.mean(x * x, axis=-1, keepdims=True)
    return x * jax.lax.rsqrt(var + LN_EPS) * w


def fused_critic_kernel(x_ref, bias_ref, wbig_ref, woff_ref, small_ref, o_ref):
    """Whole Critic forward for one batch element (grid axis = batch)."""
    S = x_ref.shape[1]
    H, DK, F, L = N_HEADS, D_KV, D_FF, N_LAYERS

    x = x_ref[0].astype(jnp.float32)            # (S, D) residual stream, f32
    bias = bias_ref[0]                          # (H*S, H*S) block-diag bias, f32

    def to_rows(a):            # (S, H*DK) -> (H*S, DK): heads onto sublanes
        return jnp.concatenate(
            [a[:, h * DK:(h + 1) * DK] for h in range(H)], axis=0)

    for l in range(L):
        wl = wbig_ref[l]                                        # (D, 256) bf16

        # ---- self-attention (T5: un-scaled), fused residual ----
        h = _rmsnorm(x, small_ref[ROW_LN1 + l:ROW_LN1 + l + 1, :])
        hb = h.astype(jnp.bfloat16)

        # fused QKV projection: one (S, D) @ (D, 96) matmul
        qkv = jnp.dot(hb, wl[:, 0:W_QKV],
                      preferred_element_type=jnp.float32)       # (S, 96) f32
        qr = to_rows(qkv[:, 0:HDK]).astype(jnp.bfloat16)        # (H*S, DK)
        kr = to_rows(qkv[:, HDK:2 * HDK]).astype(jnp.bfloat16)
        vr = to_rows(qkv[:, 2 * HDK:3 * HDK]).astype(jnp.bfloat16)

        # scores: one (H*S, DK) x (H*S, DK)^T matmul + block-diagonal bias
        s = jnp.einsum('qd,kd->qk', qr, kr,
                       preferred_element_type=jnp.float32) + bias
        # open-coded softmax; EUP reciprocal; off-block entries -> exactly 0
        m = jnp.max(s, axis=-1, keepdims=True)
        e = jnp.exp(s - m)
        p = e * pl.reciprocal(jnp.sum(e, axis=-1, keepdims=True), approx=True)

        # context: one (H*S, H*S) @ (H*S, DK) matmul
        cr = jnp.dot(p.astype(jnp.bfloat16), vr,
                     preferred_element_type=jnp.float32)        # (H*S, DK)
        # (H*S, DK) -> (S, H*DK), then out-proj with the head-sum folded in
        cflat = jnp.concatenate(
            [cr[h * S:(h + 1) * S, :] for h in range(H)], axis=1)
        attn = jnp.dot(cflat.astype(jnp.bfloat16), wl[:, W_QKV:W_O],
                       preferred_element_type=jnp.float32)      # (S, D)
        x = x + attn

        # ---- T5 v1.1 gated-GELU FFN (fused (D, 2F) weight), fused residual ----
        h = _rmsnorm(x, small_ref[ROW_LN2 + l:ROW_LN2 + l + 1, :])
        gl = jnp.dot(h.astype(jnp.bfloat16), wl[:, W_O:W_FF],
                     preferred_element_type=jnp.float32)        # (S, 2F)
        act = jax.nn.gelu(gl[:, 0:F], approximate=True) * gl[:, F:2 * F]
        x = x + jnp.dot(act.astype(jnp.bfloat16), woff_ref[l],
                        preferred_element_type=jnp.float32)

    # ---- final RMSNorm, mean-pool over seq, value head (VPU reduce), tanh ----
    x = _rmsnorm(x, small_ref[ROW_FLN:ROW_FLN + 1, :])
    pooled = jnp.mean(x, axis=0, keepdims=True)                 # (1, D)
    val = jnp.sum(pooled * small_ref[ROW_VHW:ROW_VHW + 1, :],
                  axis=-1, keepdims=True)                       # (1, 1)
    val = val + small_ref[ROW_VHB:ROW_VHB + 1, 0:1]
    o_ref[0] = jnp.tanh(val).astype(o_ref.dtype)


# ---------------- glue: rel-pos bias, bias packing, params ----------------
def _relative_position_bucket(rel_pos, num_buckets, max_distance):
    # bidirectional T5 bucketing
    num_buckets = num_buckets // 2
    ret = (rel_pos > 0).astype(jnp.int32) * num_buckets
    n = jnp.abs(rel_pos)
    max_exact = num_buckets // 2
    is_small = n < max_exact
    n_f = jnp.maximum(n, 1).astype(jnp.float32)
    val_if_large = max_exact + (
        jnp.log(n_f / max_exact) / jnp.log(max_distance / max_exact)
        * (num_buckets - max_exact)).astype(jnp.int32)
    val_if_large = jnp.minimum(val_if_large, num_buckets - 1)
    return ret + jnp.where(is_small, n, val_if_large)


def compute_position_bias(rel_table, seq_len):
    ctx = jnp.arange(seq_len)[:, None]
    mem = jnp.arange(seq_len)[None, :]
    buckets = _relative_position_bucket(mem - ctx, REL_BUCKETS, REL_MAX_DIST)
    bias = rel_table[buckets]                       # (S, S, H)
    return jnp.transpose(bias, (2, 0, 1))           # (H, S, S)


def build_attention_bias(rel_table, attention_mask):
    """(B, H*S, H*S) block-diagonal bias: rel-pos + padding mask on the
    diagonal blocks, NEG_INF off-block (prevents cross-head leakage)."""
    B, S = attention_mask.shape
    H = N_HEADS
    pos_bias = compute_position_bias(rel_table, S)                     # (H,S,S)
    mask_bias = (1.0 - attention_mask.astype(jnp.float32)) * NEG_INF   # (B,S)
    inblock = pos_bias[None] + mask_bias[:, None, None, :]             # (B,H,S,S)
    dense = jnp.broadcast_to(inblock[:, :, :, None, :], (B, H, S, H, S))
    keep = (jnp.arange(H)[:, None] == jnp.arange(H)[None, :])
    keep = keep[None, :, None, :, None]
    bias = jnp.where(keep, dense, NEG_INF)
    return bias.reshape(B, H * S, H * S).astype(jnp.float32)


def init_params(key):
    def nrm(k, shape, scale=0.05):
        return (scale * jax.random.normal(k, shape)).astype(jnp.float32)

    keys = iter(jax.random.split(key, 16))
    L, H, D, DK, F = N_LAYERS, N_HEADS, D_MODEL, D_KV, D_FF
    return {
        "embed": nrm(next(keys), (VOCAB, D), 1.0),
        "rel_bias": nrm(next(keys), (REL_BUCKETS, H)),
        "ln1": jnp.ones((L, D), jnp.float32),
        "wq": nrm(next(keys), (L, H, D, DK)),
        "wk": nrm(next(keys), (L, H, D, DK)),
        "wv": nrm(next(keys), (L, H, D, DK)),
        "wo": nrm(next(keys), (L, H, DK, D)),
        "ln2": jnp.ones((L, D), jnp.float32),
        "wi0": nrm(next(keys), (L, D, F)),
        "wi1": nrm(next(keys), (L, D, F)),
        "wo_ff": nrm(next(keys), (L, F, D)),
        "final_ln": jnp.ones((D,), jnp.float32),
        "vh_w": nrm(next(keys), (D,)),
        "vh_b": jnp.zeros((1,), jnp.float32),
    }


def pack_params(p):
    """Pack per-layer weights into one bf16 (L, D, 256) slab + one bf16
    (L, F, D) FFN out-proj + one small f32 (2L+3, D) vector table."""
    L, H, D, DK = N_LAYERS, N_HEADS, D_MODEL, D_KV
    wq = jnp.transpose(p["wq"], (0, 2, 1, 3)).reshape(L, D, H * DK)
    wk = jnp.transpose(p["wk"], (0, 2, 1, 3)).reshape(L, D, H * DK)
    wv = jnp.transpose(p["wv"], (0, 2, 1, 3)).reshape(L, D, H * DK)
    wo = p["wo"].reshape(L, H * DK, D)                  # rows = flat (head, dk)
    wi = jnp.concatenate([p["wi0"], p["wi1"]], axis=-1)  # (L, D, 2F)
    wbig = jnp.concatenate([wq, wk, wv, wo, wi], axis=-1).astype(jnp.bfloat16)
    woff = p["wo_ff"].astype(jnp.bfloat16)
    vhb_row = jnp.zeros((1, D), jnp.float32).at[0, 0].set(p["vh_b"][0])
    small = jnp.concatenate(
        [p["ln1"], p["ln2"], p["final_ln"][None, :], p["vh_w"][None, :],
         vhb_row], axis=0).astype(jnp.float32)
    return wbig, woff, small


def critic_forward(params, input_ids, attention_mask):
    B, S = input_ids.shape
    L, H, D, F = N_LAYERS, N_HEADS, D_MODEL, D_FF

    # TODO(synk): token-embedding gather + rel-pos bucket lookup stay in plain
    # JAX glue (tiny integer gathers, no clean Pallas win).
    x = params["embed"][input_ids]                                  # (B, S, D)
    bias = build_attention_bias(params["rel_bias"], attention_mask)  # (B,HS,HS)
    wbig, woff, small = pack_params(params)

    out = pl.pallas_call(
        fused_critic_kernel,
        out_shape=jax.ShapeDtypeStruct((B, 1, 1), jnp.float32),
        grid=(B,),
        in_specs=[
            pl.BlockSpec((1, S, D), lambda b: (b, 0, 0)),            # x
            pl.BlockSpec((1, H * S, H * S), lambda b: (b, 0, 0)),    # bias
            pl.BlockSpec((L, D, W_FF), lambda b: (0, 0, 0)),         # wbig
            pl.BlockSpec((L, F, D), lambda b: (0, 0, 0)),            # woff
            pl.BlockSpec((N_SMALL_ROWS, D), lambda b: (0, 0)),       # small
        ],
        out_specs=pl.BlockSpec((1, 1, 1), lambda b: (b, 0, 0)),
        compiler_params=pltpu.CompilerParams(
            dimension_semantics=("parallel",)),
    )(x, bias, wbig, woff, small)

    return out[:, 0, :]                                              # (B, 1)


if __name__ == "__main__":
    B, S = 2, 8
    key = jax.random.PRNGKey(0)
    k_params, k_ids = jax.random.split(key)
    params = init_params(k_params)

    input_ids = jax.random.randint(k_ids, (B, S), 0, VOCAB, dtype=jnp.int32)
    attention_mask = jnp.array([[1] * S, [1] * (S - 2) + [0] * 2],
                               dtype=jnp.int32)

    fwd = jax.jit(functools.partial(critic_forward, params))
    value = jax.block_until_ready(fwd(input_ids, attention_mask))

    assert value.shape == (B, 1), value.shape
    assert bool(jnp.all(jnp.isfinite(value)))
    assert bool(jnp.all(jnp.abs(value) <= 1.0))   # tanh range
    print("KERNEL_OK")
</pallas_src>

<mosaic_0001>
module attributes {stable_mosaic.version = 11 : i64} {
  func.func @fused_critic_kernel(%arg0: i32, %arg1: memref<1x8x32xf32, #tpu.memory_space<vmem>>, %arg2: memref<1x32x32xf32, #tpu.memory_space<vmem>>, %arg3: memref<2x32x256xbf16, #tpu.memory_space<vmem>>, %arg4: memref<2x64x32xbf16, #tpu.memory_space<vmem>>, %arg5: memref<7x32xf32, #tpu.memory_space<vmem>>, %arg6: memref<1x1x1xf32, #tpu.memory_space<vmem>>) attributes {dimension_semantics = [#tpu.dimension_semantics<parallel>], iteration_bounds = array<i64: 2>, scalar_prefetch = 0 : i64, scratch_operands = 0 : i64, tpu.core_type = #tpu.core_type<tc>, window_params = [{transform_indices = @transform_0, window_bounds = array<i64: 1, 8, 32>}, {transform_indices = @transform_1, window_bounds = array<i64: 1, 32, 32>}, {pipeline_mode = #tpu.pipeline_mode<synchronous>, transform_indices = @transform_2, window_bounds = array<i64: 2, 32, 256>}, {pipeline_mode = #tpu.pipeline_mode<synchronous>, transform_indices = @transform_3, window_bounds = array<i64: 2, 64, 32>}, {pipeline_mode = #tpu.pipeline_mode<synchronous>, transform_indices = @transform_4, window_bounds = array<i64: 7, 32>}, {transform_indices = @transform_5, window_bounds = array<i64: 1, 1, 1>}]} {
    %c0 = arith.constant 0 : index
    %c0_0 = arith.constant 0 : index
    %c0_1 = arith.constant 0 : index
    %0 = vector.load %arg1[%c0, %c0_0, %c0_1] : memref<1x8x32xf32, #tpu.memory_space<vmem>>, vector<1x8x32xf32>
    %1 = vector.shape_cast %0 : vector<1x8x32xf32> to vector<8x32xf32>
    %c0_2 = arith.constant 0 : index
    %c0_3 = arith.constant 0 : index
    %c0_4 = arith.constant 0 : index
    %2 = vector.load %arg2[%c0_2, %c0_3, %c0_4] : memref<1x32x32xf32, #tpu.memory_space<vmem>>, vector<1x32x32xf32>
    %3 = vector.shape_cast %2 : vector<1x32x32xf32> to vector<32x32xf32>
    %c0_5 = arith.constant 0 : index
    %c0_6 = arith.constant 0 : index
    %c0_7 = arith.constant 0 : index
    %4 = vector.load %arg3[%c0_5, %c0_6, %c0_7] : memref<2x32x256xbf16, #tpu.memory_space<vmem>>, vector<1x32x256xbf16>
    %5 = vector.shape_cast %4 : vector<1x32x256xbf16> to vector<32x256xbf16>
    %c0_8 = arith.constant 0 : index
    %c0_9 = arith.constant 0 : index
    %6 = vector.load %arg5[%c0_8, %c0_9] : memref<7x32xf32, #tpu.memory_space<vmem>>, vector<1x32xf32>
    %7 = arith.mulf %1, %1 : vector<8x32xf32>
    %cst = arith.constant dense<0.000000e+00> : vector<8xf32>
    %8 = vector.multi_reduction <add>, %7, %cst [1] : vector<8x32xf32> to vector<8xf32>
    %9 = vector.shape_cast %8 : vector<8xf32> to vector<8x1xf32>
    %cst_10 = arith.constant 3.200000e+01 : f32
    %10 = vector.broadcast %cst_10 : f32 to vector<8x1xf32>
    %11 = arith.divf %9, %10 : vector<8x1xf32>
    %cst_11 = arith.constant 9.99999997E-7 : f32
    %12 = vector.broadcast %cst_11 : f32 to vector<8x1xf32>
    %13 = arith.addf %11, %12 : vector<8x1xf32>
    %14 = math.rsqrt %13 : vector<8x1xf32>
    %15 = vector.broadcast %14 : vector<8x1xf32> to vector<8x32xf32>
    %16 = arith.mulf %1, %15 : vector<8x32xf32>
    %17 = vector.broadcast %6 : vector<1x32xf32> to vector<8x32xf32>
    %18 = arith.mulf %16, %17 : vector<8x32xf32>
    %19 = arith.truncf %18 : vector<8x32xf32> to vector<8x32xbf16>
    %20 = vector.extract_strided_slice %5 {offsets = [0, 0], sizes = [32, 96], strides = [1, 1]} : vector<32x256xbf16> to vector<32x96xbf16>
    %cst_12 = arith.constant dense<0.000000e+00> : vector<8x96xf32>
    %21 = tpu.matmul %19, %20, %cst_12 {dimension_numbers = #tpu.dot_dimension_numbers<[1], [0], [0], [1], [0, 0, 1, 1], [], []>} : vector<8x32xbf16>, vector<32x96xbf16>, vector<8x96xf32> -> vector<8x96xf32>
    %22 = vector.extract_strided_slice %21 {offsets = [0, 0], sizes = [8, 32], strides = [1, 1]} : vector<8x96xf32> to vector<8x32xf32>
    %23 = vector.extract_strided_slice %22 {offsets = [0, 0], sizes = [8, 8], strides = [1, 1]} : vector<8x32xf32> to vector<8x8xf32>
    %24 = vector.extract_strided_slice %22 {offsets = [0, 8], sizes = [8, 8], strides = [1, 1]} : vector<8x32xf32> to vector<8x8xf32>
    %25 = vector.extract_strided_slice %22 {offsets = [0, 16], sizes = [8, 8], strides = [1, 1]} : vector<8x32xf32> to vector<8x8xf32>
    %26 = vector.extract_strided_slice %22 {offsets = [0, 24], sizes = [8, 8], strides = [1, 1]} : vector<8x32xf32> to vector<8x8xf32>
    %27 = tpu.concatenate %23, %24, %25, %26 in 0 : vector<8x8xf32>, vector<8x8xf32>, vector<8x8xf32>, vector<8x8xf32> -> vector<32x8xf32>
    %28 = arith.truncf %27 : vector<32x8xf32> to vector<32x8xbf16>
    %29 = vector.extract_strided_slice %21 {offsets = [0, 32], sizes = [8, 32], strides = [1, 1]} : vector<8x96xf32> to vector<8x32xf32>
    %30 = vector.extract_strided_slice %29 {offsets = [0, 0], sizes = [8, 8], strides = [1, 1]} : vector<8x32xf32> to vector<8x8xf32>
    %31 = vector.extract_strided_slice %29 {offsets = [0, 8], sizes = [8, 8], strides = [1, 1]} : vector<8x32xf32> to vector<8x8xf32>
    %32 = vector.extract_strided_slice %29 {offsets = [0, 16], sizes = [8, 8], strides = [1, 1]} : vector<8x32xf32> to vector<8x8xf32>
    %33 = vector.extract_strided_slice %29 {offsets = [0, 24], sizes = [8, 8], strides = [1, 1]} : vector<8x32xf32> to vector<8x8xf32>
    %34 = tpu.concatenate %30, %31, %32, %33 in 0 : vector<8x8xf32>, vector<8x8xf32>, vector<8x8xf32>, vector<8x8xf32> -> vector<32x8xf32>
    %35 = arith.truncf %34 : vector<32x8xf32> to vector<32x8xbf16>
    %36 = vector.extract_strided_slice %21 {offsets = [0, 64], sizes = [8, 32], strides = [1, 1]} : vector<8x96xf32> to vector<8x32xf32>
    %37 = vector.extract_strided_slice %36 {offsets = [0, 0], sizes = [8, 8], strides = [1, 1]} : vector<8x32xf32> to vector<8x8xf32>
    %38 = vector.extract_strided_slice %36 {offsets = [0, 8], sizes = [8, 8], strides = [1, 1]} : vector<8x32xf32> to vector<8x8xf32>
    %39 = vector.extract_strided_slice %36 {offsets = [0, 16], sizes = [8, 8], strides = [1, 1]} : vector<8x32xf32> to vector<8x8xf32>
    %40 = vector.extract_strided_slice %36 {offsets = [0, 24], sizes = [8, 8], strides = [1, 1]} : vector<8x32xf32> to vector<8x8xf32>
    %41 = tpu.concatenate %37, %38, %39, %40 in 0 : vector<8x8xf32>, vector<8x8xf32>, vector<8x8xf32>, vector<8x8xf32> -> vector<32x8xf32>
    %42 = arith.truncf %41 : vector<32x8xf32> to vector<32x8xbf16>
    "tpu.trace_start"() <{level = 10 : i32, message = "qd,kd->qk"}> : () -> ()
    %cst_13 = arith.constant dense<0.000000e+00> : vector<32x32xf32>
    %43 = tpu.matmul %28, %35, %cst_13 {dimension_numbers = #tpu.dot_dimension_numbers<[1], [1], [0], [0], [0, 0, 1, 0], [], []>} : vector<32x8xbf16>, vector<32x8xbf16>, vector<32x32xf32> -> vector<32x32xf32>
    "tpu.trace_stop"() : () -> ()
    %44 = arith.addf %43, %3 : vector<32x32xf32>
    %cst_14 = arith.constant dense<0xFF800000> : vector<32xf32>
    %45 = vector.multi_reduction <maximumf>, %44, %cst_14 [1] : vector<32x32xf32> to vector<32xf32>
    %46 = vector.shape_cast %45 : vector<32xf32> to vector<32x1xf32>
    %47 = vector.broadcast %46 : vector<32x1xf32> to vector<32x32xf32>
    %48 = arith.subf %44, %47 : vector<32x32xf32>
    %49 = math.exp %48 : vector<32x32xf32>
    %cst_15 = arith.constant dense<0.000000e+00> : vector<32xf32>
    %50 = vector.multi_reduction <add>, %49, %cst_15 [1] : vector<32x32xf32> to vector<32xf32>
    %51 = vector.shape_cast %50 : vector<32xf32> to vector<32x1xf32>
    %52 = tpu.reciprocal %51 {approx = true} : vector<32x1xf32> -> vector<32x1xf32>
    %53 = vector.broadcast %52 : vector<32x1xf32> to vector<32x32xf32>
    %54 = arith.mulf %49, %53 : vector<32x32xf32>
    %55 = arith.truncf %54 : vector<32x32xf32> to vector<32x32xbf16>
    %cst_16 = arith.constant dense<0.000000e+00> : vector<32x8xf32>
    %56 = tpu.matmul %55, %42, %cst_16 {dimension_numbers = #tpu.dot_dimension_numbers<[1], [0], [0], [1], [0, 0, 1, 1], [], []>} : vector<32x32xbf16>, vector<32x8xbf16>, vector<32x8xf32> -> vector<32x8xf32>
    %57 = vector.extract_strided_slice %56 {offsets = [0, 0], sizes = [8, 8], strides = [1, 1]} : vector<32x8xf32> to vector<8x8xf32>
    %58 = vector.extract_strided_slice %56 {offsets = [8, 0], sizes = [8, 8], strides = [1, 1]} : vector<32x8xf32> to vector<8x8xf32>
    %59 = vector.extract_strided_slice %56 {offsets = [16, 0], sizes = [8, 8], strides = [1, 1]} : vector<32x8xf32> to vector<8x8xf32>
    %60 = vector.extract_strided_slice %56 {offsets = [24, 0], sizes = [8, 8], strides = [1, 1]} : vector<32x8xf32> to vector<8x8xf32>
    %61 = tpu.concatenate %57, %58, %59, %60 in 1 : vector<8x8xf32>, vector<8x8xf32>, vector<8x8xf32>, vector<8x8xf32> -> vector<8x32xf32>
    %62 = arith.truncf %61 : vector<8x32xf32> to vector<8x32xbf16>
    %63 = vector.extract_strided_slice %5 {offsets = [0, 96], sizes = [32, 32], strides = [1, 1]} : vector<32x256xbf16> to vector<32x32xbf16>
    %cst_17 = arith.constant dense<0.000000e+00> : vector<8x32xf32>
    %64 = tpu.matmul %62, %63, %cst_17 {dimension_numbers = #tpu.dot_dimension_numbers<[1], [0], [0], [1], [0, 0, 1, 1], [], []>} : vector<8x32xbf16>, vector<32x32xbf16>, vector<8x32xf32> -> vector<8x32xf32>
    %65 = arith.addf %1, %64 : vector<8x32xf32>
    %c2 = arith.constant 2 : index
    %c0_18 = arith.constant 0 : index
    %66 = vector.load %arg5[%c2, %c0_18] : memref<7x32xf32, #tpu.memory_space<vmem>>, vector<1x32xf32>
    %67 = arith.mulf %65, %65 : vector<8x32xf32>
    %cst_19 = arith.constant dense<0.000000e+00> : vector<8xf32>
    %68 = vector.multi_reduction <add>, %67, %cst_19 [1] : vector<8x32xf32> to vector<8xf32>
    %69 = vector.shape_cast %68 : vector<8xf32> to vector<8x1xf32>
    %cst_20 = arith.constant 3.200000e+01 : f32
    %70 = vector.broadcast %cst_20 : f32 to vector<8x1xf32>
    %71 = arith.divf %69, %70 : vector<8x1xf32>
    %cst_21 = arith.constant 9.99999997E-7 : f32
    %72 = vector.broadcast %cst_21 : f32 to vector<8x1xf32>
    %73 = arith.addf %71, %72 : vector<8x1xf32>
    %74 = math.rsqrt %73 : vector<8x1xf32>
    %75 = vector.broadcast %74 : vector<8x1xf32> to vector<8x32xf32>
    %76 = arith.mulf %65, %75 : vector<8x32xf32>
    %77 = vector.broadcast %66 : vector<1x32xf32> to vector<8x32xf32>
    %78 = arith.mulf %76, %77 : vector<8x32xf32>
    %79 = arith.truncf %78 : vector<8x32xf32> to vector<8x32xbf16>
    %80 = vector.extract_strided_slice %5 {offsets = [0, 128], sizes = [32, 128], strides = [1, 1]} : vector<32x256xbf16> to vector<32x128xbf16>
    %cst_22 = arith.constant dense<0.000000e+00> : vector<8x128xf32>
    %81 = tpu.matmul %79, %80, %cst_22 {dimension_numbers = #tpu.dot_dimension_numbers<[1], [0], [0], [1], [0, 0, 1, 1], [], []>} : vector<8x32xbf16>, vector<32x128xbf16>, vector<8x128xf32> -> vector<8x128xf32>
    %82 = vector.extract_strided_slice %81 {offsets = [0, 0], sizes = [8, 64], strides = [1, 1]} : vector<8x128xf32> to vector<8x64xf32>
    %83 = arith.mulf %82, %82 : vector<8x64xf32>
    %84 = arith.mulf %82, %83 : vector<8x64xf32>
    %cst_23 = arith.constant 4.471500e-02 : f32
    %85 = vector.broadcast %cst_23 : f32 to vector<8x64xf32>
    %86 = arith.mulf %85, %84 : vector<8x64xf32>
    %87 = arith.addf %82, %86 : vector<8x64xf32>
    %cst_24 = arith.constant 0.797884583 : f32
    %88 = vector.broadcast %cst_24 : f32 to vector<8x64xf32>
    %89 = arith.mulf %88, %87 : vector<8x64xf32>
    %90 = math.tanh %89 : vector<8x64xf32>
    %cst_25 = arith.constant 1.000000e+00 : f32
    %91 = vector.broadcast %cst_25 : f32 to vector<8x64xf32>
    %92 = arith.addf %91, %90 : vector<8x64xf32>
    %cst_26 = arith.constant 5.000000e-01 : f32
    %93 = vector.broadcast %cst_26 : f32 to vector<8x64xf32>
    %94 = arith.mulf %93, %92 : vector<8x64xf32>
    %95 = arith.mulf %82, %94 : vector<8x64xf32>
    %96 = vector.extract_strided_slice %81 {offsets = [0, 64], sizes = [8, 64], strides = [1, 1]} : vector<8x128xf32> to vector<8x64xf32>
    %97 = arith.mulf %95, %96 : vector<8x64xf32>
    %98 = arith.truncf %97 : vector<8x64xf32> to vector<8x64xbf16>
    %c0_27 = arith.constant 0 : index
    %c0_28 = arith.constant 0 : index
    %c0_29 = arith.constant 0 : index
    %99 = vector.load %arg4[%c0_27, %c0_28, %c0_29] : memref<2x64x32xbf16, #tpu.memory_space<vmem>>, vector<1x64x32xbf16>
    %100 = vector.shape_cast %99 : vector<1x64x32xbf16> to vector<64x32xbf16>
    %cst_30 = arith.constant dense<0.000000e+00> : vector<8x32xf32>
    %101 = tpu.matmul %98, %100, %cst_30 {dimension_numbers = #tpu.dot_dimension_numbers<[1], [0], [0], [1], [0, 0, 1, 1], [], []>} : vector<8x64xbf16>, vector<64x32xbf16>, vector<8x32xf32> -> vector<8x32xf32>
    %102 = arith.addf %65, %101 : vector<8x32xf32>
    %c1 = arith.constant 1 : index
    %c0_31 = arith.constant 0 : index
    %c0_32 = arith.constant 0 : index
    %103 = vector.load %arg3[%c1, %c0_31, %c0_32] : memref<2x32x256xbf16, #tpu.memory_space<vmem>>, vector<1x32x256xbf16>
    %104 = vector.shape_cast %103 : vector<1x32x256xbf16> to vector<32x256xbf16>
    %c1_33 = arith.constant 1 : index
    %c0_34 = arith.constant 0 : index
    %105 = vector.load %arg5[%c1_33, %c0_34] : memref<7x32xf32, #tpu.memory_space<vmem>>, vector<1x32xf32>
    %106 = arith.mulf %102, %102 : vector<8x32xf32>
    %cst_35 = arith.constant dense<0.000000e+00> : vector<8xf32>
    %107 = vector.multi_reduction <add>, %106, %cst_35 [1] : vector<8x32xf32> to vector<8xf32>
    %108 = vector.shape_cast %107 : vector<8xf32> to vector<8x1xf32>
    %cst_36 = arith.constant 3.200000e+01 : f32
    %109 = vector.broadcast %cst_36 : f32 to vector<8x1xf32>
    %110 = arith.divf %108, %109 : vector<8x1xf32>
    %cst_37 = arith.constant 9.99999997E-7 : f32
    %111 = vector.broadcast %cst_37 : f32 to vector<8x1xf32>
    %112 = arith.addf %110, %111 : vector<8x1xf32>
    %113 = math.rsqrt %112 : vector<8x1xf32>
    %114 = vector.broadcast %113 : vector<8x1xf32> to vector<8x32xf32>
    %115 = arith.mulf %102, %114 : vector<8x32xf32>
    %116 = vector.broadcast %105 : vector<1x32xf32> to vector<8x32xf32>
    %117 = arith.mulf %115, %116 : vector<8x32xf32>
    %118 = arith.truncf %117 : vector<8x32xf32> to vector<8x32xbf16>
    %119 = vector.extract_strided_slice %104 {offsets = [0, 0], sizes = [32, 96], strides = [1, 1]} : vector<32x256xbf16> to vector<32x96xbf16>
    %cst_38 = arith.constant dense<0.000000e+00> : vector<8x96xf32>
    %120 = tpu.matmul %118, %119, %cst_38 {dimension_numbers = #tpu.dot_dimension_numbers<[1], [0], [0], [1], [0, 0, 1, 1], [], []>} : vector<8x32xbf16>, vector<32x96xbf16>, vector<8x96xf32> -> vector<8x96xf32>
    %121 = vector.extract_strided_slice %120 {offsets = [0, 0], sizes = [8, 32], strides = [1, 1]} : vector<8x96xf32> to vector<8x32xf32>
    %122 = vector.extract_strided_slice %121 {offsets = [0, 0], sizes = [8, 8], strides = [1, 1]} : vector<8x32xf32> to vector<8x8xf32>
    %123 = vector.extract_strided_slice %121 {offsets = [0, 8], sizes = [8, 8], strides = [1, 1]} : vector<8x32xf32> to vector<8x8xf32>
    %124 = vector.extract_strided_slice %121 {offsets = [0, 16], sizes = [8, 8], strides = [1, 1]} : vector<8x32xf32> to vector<8x8xf32>
    %125 = vector.extract_strided_slice %121 {offsets = [0, 24], sizes = [8, 8], strides = [1, 1]} : vector<8x32xf32> to vector<8x8xf32>
    %126 = tpu.concatenate %122, %123, %124, %125 in 0 : vector<8x8xf32>, vector<8x8xf32>, vector<8x8xf32>, vector<8x8xf32> -> vector<32x8xf32>
    %127 = arith.truncf %126 : vector<32x8xf32> to vector<32x8xbf16>
    %128 = vector.extract_strided_slice %120 {offsets = [0, 32], sizes = [8, 32], strides = [1, 1]} : vector<8x96xf32> to vector<8x32xf32>
    %129 = vector.extract_strided_slice %128 {offsets = [0, 0], sizes = [8, 8], strides = [1, 1]} : vector<8x32xf32> to vector<8x8xf32>
    %130 = vector.extract_strided_slice %128 {offsets = [0, 8], sizes = [8, 8], strides = [1, 1]} : vector<8x32xf32> to vector<8x8xf32>
    %131 = vector.extract_strided_slice %128 {offsets = [0, 16], sizes = [8, 8], strides = [1, 1]} : vector<8x32xf32> to vector<8x8xf32>
    %132 = vector.extract_strided_slice %128 {offsets = [0, 24], sizes = [8, 8], strides = [1, 1]} : vector<8x32xf32> to vector<8x8xf32>
    %133 = tpu.concatenate %129, %130, %131, %132 in 0 : vector<8x8xf32>, vector<8x8xf32>, vector<8x8xf32>, vector<8x8xf32> -> vector<32x8xf32>
    %134 = arith.truncf %133 : vector<32x8xf32> to vector<32x8xbf16>
    %135 = vector.extract_strided_slice %120 {offsets = [0, 64], sizes = [8, 32], strides = [1, 1]} : vector<8x96xf32> to vector<8x32xf32>
    %136 = vector.extract_strided_slice %135 {offsets = [0, 0], sizes = [8, 8], strides = [1, 1]} : vector<8x32xf32> to vector<8x8xf32>
    %137 = vector.extract_strided_slice %135 {offsets = [0, 8], sizes = [8, 8], strides = [1, 1]} : vector<8x32xf32> to vector<8x8xf32>
    %138 = vector.extract_strided_slice %135 {offsets = [0, 16], sizes = [8, 8], strides = [1, 1]} : vector<8x32xf32> to vector<8x8xf32>
    %139 = vector.extract_strided_slice %135 {offsets = [0, 24], sizes = [8, 8], strides = [1, 1]} : vector<8x32xf32> to vector<8x8xf32>
    %140 = tpu.concatenate %136, %137, %138, %139 in 0 : vector<8x8xf32>, vector<8x8xf32>, vector<8x8xf32>, vector<8x8xf32> -> vector<32x8xf32>
    %141 = arith.truncf %140 : vector<32x8xf32> to vector<32x8xbf16>
    "tpu.trace_start"() <{level = 10 : i32, message = "qd,kd->qk"}> : () -> ()
    %cst_39 = arith.constant dense<0.000000e+00> : vector<32x32xf32>
    %142 = tpu.matmul %127, %134, %cst_39 {dimension_numbers = #tpu.dot_dimension_numbers<[1], [1], [0], [0], [0, 0, 1, 0], [], []>} : vector<32x8xbf16>, vector<32x8xbf16>, vector<32x32xf32> -> vector<32x32xf32>
    "tpu.trace_stop"() : () -> ()
    %143 = arith.addf %142, %3 : vector<32x32xf32>
    %cst_40 = arith.constant dense<0xFF800000> : vector<32xf32>
    %144 = vector.multi_reduction <maximumf>, %143, %cst_40 [1] : vector<32x32xf32> to vector<32xf32>
    %145 = vector.shape_cast %144 : vector<32xf32> to vector<32x1xf32>
    %146 = vector.broadcast %145 : vector<32x1xf32> to vector<32x32xf32>
    %147 = arith.subf %143, %146 : vector<32x32xf32>
    %148 = math.exp %147 : vector<32x32xf32>
    %cst_41 = arith.constant dense<0.000000e+00> : vector<32xf32>
    %149 = vector.multi_reduction <add>, %148, %cst_41 [1] : vector<32x32xf32> to vector<32xf32>
    %150 = vector.shape_cast %149 : vector<32xf32> to vector<32x1xf32>
    %151 = tpu.reciprocal %150 {approx = true} : vector<32x1xf32> -> vector<32x1xf32>
    %152 = vector.broadcast %151 : vector<32x1xf32> to vector<32x32xf32>
    %153 = arith.mulf %148, %152 : vector<32x32xf32>
    %154 = arith.truncf %153 : vector<32x32xf32> to vector<32x32xbf16>
    %cst_42 = arith.constant dense<0.000000e+00> : vector<32x8xf32>
    %155 = tpu.matmul %154, %141, %cst_42 {dimension_numbers = #tpu.dot_dimension_numbers<[1], [0], [0], [1], [0, 0, 1, 1], [], []>} : vector<32x32xbf16>, vector<32x8xbf16>, vector<32x8xf32> -> vector<32x8xf32>
    %156 = vector.extract_strided_slice %155 {offsets = [0, 0], sizes = [8, 8], strides = [1, 1]} : vector<32x8xf32> to vector<8x8xf32>
    %157 = vector.extract_strided_slice %155 {offsets = [8, 0], sizes = [8, 8], strides = [1, 1]} : vector<32x8xf32> to vector<8x8xf32>
    %158 = vector.extract_strided_slice %155 {offsets = [16, 0], sizes = [8, 8], strides = [1, 1]} : vector<32x8xf32> to vector<8x8xf32>
    %159 = vector.extract_strided_slice %155 {offsets = [24, 0], sizes = [8, 8], strides = [1, 1]} : vector<32x8xf32> to vector<8x8xf32>
    %160 = tpu.concatenate %156, %157, %158, %159 in 1 : vector<8x8xf32>, vector<8x8xf32>, vector<8x8xf32>, vector<8x8xf32> -> vector<8x32xf32>
    %161 = arith.truncf %160 : vector<8x32xf32> to vector<8x32xbf16>
    %162 = vector.extract_strided_slice %104 {offsets = [0, 96], sizes = [32, 32], strides = [1, 1]} : vector<32x256xbf16> to vector<32x32xbf16>
    %cst_43 = arith.constant dense<0.000000e+00> : vector<8x32xf32>
    %163 = tpu.matmul %161, %162, %cst_43 {dimension_numbers = #tpu.dot_dimension_numbers<[1], [0], [0], [1], [0, 0, 1, 1], [], []>} : vector<8x32xbf16>, vector<32x32xbf16>, vector<8x32xf32> -> vector<8x32xf32>
    %164 = arith.addf %102, %163 : vector<8x32xf32>
    %c3 = arith.constant 3 : index
    %c0_44 = arith.constant 0 : index
    %165 = vector.load %arg5[%c3, %c0_44] : memref<7x32xf32, #tpu.memory_space<vmem>>, vector<1x32xf32>
    %166 = arith.mulf %164, %164 : vector<8x32xf32>
    %cst_45 = arith.constant dense<0.000000e+00> : vector<8xf32>
    %167 = vector.multi_reduction <add>, %166, %cst_45 [1] : vector<8x32xf32> to vector<8xf32>
    %168 = vector.shape_cast %167 : vector<8xf32> to vector<8x1xf32>
    %cst_46 = arith.constant 3.200000e+01 : f32
    %169 = vector.broadcast %cst_46 : f32 to vector<8x1xf32>
    %170 = arith.divf %168, %169 : vector<8x1xf32>
    %cst_47 = arith.constant 9.99999997E-7 : f32
    %171 = vector.broadcast %cst_47 : f32 to vector<8x1xf32>
    %172 = arith.addf %170, %171 : vector<8x1xf32>
    %173 = math.rsqrt %172 : vector<8x1xf32>
    %174 = vector.broadcast %173 : vector<8x1xf32> to vector<8x32xf32>
    %175 = arith.mulf %164, %174 : vector<8x32xf32>
    %176 = vector.broadcast %165 : vector<1x32xf32> to vector<8x32xf32>
    %177 = arith.mulf %175, %176 : vector<8x32xf32>
    %178 = arith.truncf %177 : vector<8x32xf32> to vector<8x32xbf16>
    %179 = vector.extract_strided_slice %104 {offsets = [0, 128], sizes = [32, 128], strides = [1, 1]} : vector<32x256xbf16> to vector<32x128xbf16>
    %cst_48 = arith.constant dense<0.000000e+00> : vector<8x128xf32>
    %180 = tpu.matmul %178, %179, %cst_48 {dimension_numbers = #tpu.dot_dimension_numbers<[1], [0], [0], [1], [0, 0, 1, 1], [], []>} : vector<8x32xbf16>, vector<32x128xbf16>, vector<8x128xf32> -> vector<8x128xf32>
    %181 = vector.extract_strided_slice %180 {offsets = [0, 0], sizes = [8, 64], strides = [1, 1]} : vector<8x128xf32> to vector<8x64xf32>
    %182 = arith.mulf %181, %181 : vector<8x64xf32>
    %183 = arith.mulf %181, %182 : vector<8x64xf32>
    %cst_49 = arith.constant 4.471500e-02 : f32
    %184 = vector.broadcast %cst_49 : f32 to vector<8x64xf32>
    %185 = arith.mulf %184, %183 : vector<8x64xf32>
    %186 = arith.addf %181, %185 : vector<8x64xf32>
    %cst_50 = arith.constant 0.797884583 : f32
    %187 = vector.broadcast %cst_50 : f32 to vector<8x64xf32>
    %188 = arith.mulf %187, %186 : vector<8x64xf32>
    %189 = math.tanh %188 : vector<8x64xf32>
    %cst_51 = arith.constant 1.000000e+00 : f32
    %190 = vector.broadcast %cst_51 : f32 to vector<8x64xf32>
    %191 = arith.addf %190, %189 : vector<8x64xf32>
    %cst_52 = arith.constant 5.000000e-01 : f32
    %192 = vector.broadcast %cst_52 : f32 to vector<8x64xf32>
    %193 = arith.mulf %192, %191 : vector<8x64xf32>
    %194 = arith.mulf %181, %193 : vector<8x64xf32>
    %195 = vector.extract_strided_slice %180 {offsets = [0, 64], sizes = [8, 64], strides = [1, 1]} : vector<8x128xf32> to vector<8x64xf32>
    %196 = arith.mulf %194, %195 : vector<8x64xf32>
    %197 = arith.truncf %196 : vector<8x64xf32> to vector<8x64xbf16>
    %c1_53 = arith.constant 1 : index
    %c0_54 = arith.constant 0 : index
    %c0_55 = arith.constant 0 : index
    %198 = vector.load %arg4[%c1_53, %c0_54, %c0_55] : memref<2x64x32xbf16, #tpu.memory_space<vmem>>, vector<1x64x32xbf16>
    %199 = vector.shape_cast %198 : vector<1x64x32xbf16> to vector<64x32xbf16>
    %cst_56 = arith.constant dense<0.000000e+00> : vector<8x32xf32>
    %200 = tpu.matmul %197, %199, %cst_56 {dimension_numbers = #tpu.dot_dimension_numbers<[1], [0], [0], [1], [0, 0, 1, 1], [], []>} : vector<8x64xbf16>, vector<64x32xbf16>, vector<8x32xf32> -> vector<8x32xf32>
    %201 = arith.addf %164, %200 : vector<8x32xf32>
    %c4 = arith.constant 4 : index
    %c0_57 = arith.constant 0 : index
    %202 = vector.load %arg5[%c4, %c0_57] : memref<7x32xf32, #tpu.memory_space<vmem>>, vector<1x32xf32>
    %203 = arith.mulf %201, %201 : vector<8x32xf32>
    %cst_58 = arith.constant dense<0.000000e+00> : vector<8xf32>
    %204 = vector.multi_reduction <add>, %203, %cst_58 [1] : vector<8x32xf32> to vector<8xf32>
    %205 = vector.shape_cast %204 : vector<8xf32> to vector<8x1xf32>
    %cst_59 = arith.constant 3.200000e+01 : f32
    %206 = vector.broadcast %cst_59 : f32 to vector<8x1xf32>
    %207 = arith.divf %205, %206 : vector<8x1xf32>
    %cst_60 = arith.constant 9.99999997E-7 : f32
    %208 = vector.broadcast %cst_60 : f32 to vector<8x1xf32>
    %209 = arith.addf %207, %208 : vector<8x1xf32>
    %210 = math.rsqrt %209 : vector<8x1xf32>
    %211 = vector.broadcast %210 : vector<8x1xf32> to vector<8x32xf32>
    %212 = arith.mulf %201, %211 : vector<8x32xf32>
    %213 = vector.broadcast %202 : vector<1x32xf32> to vector<8x32xf32>
    %214 = arith.mulf %212, %213 : vector<8x32xf32>
    %cst_61 = arith.constant dense<0.000000e+00> : vector<32xf32>
    %215 = vector.multi_reduction <add>, %214, %cst_61 [0] : vector<8x32xf32> to vector<32xf32>
    %216 = vector.shape_cast %215 : vector<32xf32> to vector<1x32xf32>
    %cst_62 = arith.constant 8.000000e+00 : f32
    %217 = vector.broadcast %cst_62 : f32 to vector<1x32xf32>
    %218 = arith.divf %216, %217 : vector<1x32xf32>
    %c5 = arith.constant 5 : index
    %c0_63 = arith.constant 0 : index
    %219 = vector.load %arg5[%c5, %c0_63] : memref<7x32xf32, #tpu.memory_space<vmem>>, vector<1x32xf32>
    %220 = arith.mulf %218, %219 : vector<1x32xf32>
    %cst_64 = arith.constant dense<0.000000e+00> : vector<1xf32>
    %221 = vector.multi_reduction <add>, %220, %cst_64 [1] : vector<1x32xf32> to vector<1xf32>
    %222 = vector.shape_cast %221 : vector<1xf32> to vector<1x1xf32>
    %c6 = arith.constant 6 : index
    %c0_65 = arith.constant 0 : index
    %223 = vector.load %arg5[%c6, %c0_65] : memref<7x32xf32, #tpu.memory_space<vmem>>, vector<1x1xf32>
    %224 = arith.addf %222, %223 : vector<1x1xf32>
    %225 = math.tanh %224 : vector<1x1xf32>
    %c0_66 = arith.constant 0 : index
    %c0_67 = arith.constant 0 : index
    %c0_68 = arith.constant 0 : index
    %226 = vector.load %arg6[%c0_66, %c0_67, %c0_68] : memref<1x1x1xf32, #tpu.memory_space<vmem>>, vector<1x1x1xf32>
    %227 = vector.shape_cast %226 : vector<1x1x1xf32> to vector<1x1xf32>
    %228 = vector.shape_cast %225 : vector<1x1xf32> to vector<1x1x1xf32>
    tpu.vector_store %arg6[%c0_66, %c0_67, %c0_68], %228 {strides = array<i32>} : memref<1x1x1xf32, #tpu.memory_space<vmem>>, vector<1x1x1xf32>,
    return
  }
  func.func @transform_0(%arg0: i32) -> (i32, i32, i32) {
    %c0_i32 = arith.constant 0 : i32
    %c0_i32_0 = arith.constant 0 : i32
    %c0_i32_1 = arith.constant 0 : i32
    return %arg0, %c0_i32, %c0_i32_0 : i32, i32, i32
  }
  func.func @transform_1(%arg0: i32) -> (i32, i32, i32) {
    %c0_i32 = arith.constant 0 : i32
    %c0_i32_0 = arith.constant 0 : i32
    %c0_i32_1 = arith.constant 0 : i32
    return %arg0, %c0_i32, %c0_i32_0 : i32, i32, i32
  }
  func.func @transform_2(%arg0: i32) -> (i32, i32, i32) {
    %c0_i32 = arith.constant 0 : i32
    %c0_i32_0 = arith.constant 0 : i32
    %c0_i32_1 = arith.constant 0 : i32
    %c0_i32_2 = arith.constant 0 : i32
    return %c0_i32, %c0_i32_0, %c0_i32_1 : i32, i32, i32
  }
  func.func @transform_3(%arg0: i32) -> (i32, i32, i32) {
    %c0_i32 = arith.constant 0 : i32
    %c0_i32_0 = arith.constant 0 : i32
    %c0_i32_1 = arith.constant 0 : i32
    %c0_i32_2 = arith.constant 0 : i32
    return %c0_i32, %c0_i32_0, %c0_i32_1 : i32, i32, i32
  }
  func.func @transform_4(%arg0: i32) -> (i32, i32) {
    %c0_i32 = arith.constant 0 : i32
    %c0_i32_0 = arith.constant 0 : i32
    %c0_i32_1 = arith.constant 0 : i32
    return %c0_i32, %c0_i32_0 : i32, i32
  }
  func.func @transform_5(%arg0: i32) -> (i32, i32, i32) {
    %c0_i32 = arith.constant 0 : i32
    %c0_i32_0 = arith.constant 0 : i32
    %c0_i32_1 = arith.constant 0 : i32
    return %arg0, %c0_i32, %c0_i32_0 : i32, i32, i32
  }
}

</mosaic_0001>

<llo_original>
// kernel: critic_forward.1
$region0: #{critic_forward.1}
  #allocation0 [shape = 'u32[]', space=smem, size = 0x4, offset = 0x4, fixed_abs, tag = 'smem constant byte address 0x4 - core index']
  #allocation1 [shape = 'u32[72,128]{1,0:T(1,128)}', space=vmem, size = 0x9000, scoped, tag = 'internal scratch']
  %s0 = inlined_call_operand.vmem [shape: f32[2,8,32], index: 0, kind: input, shape index: {}]
  %s1 = inlined_call_operand.vmem [shape: f32[2,32,32], index: 1, kind: input, shape index: {}]
  %s2 = inlined_call_operand.vmem [shape: bf16[2,32,256], index: 2, kind: input, shape index: {}]
  %s3 = inlined_call_operand.vmem [shape: bf16[2,64,32], index: 3, kind: input, shape index: {}]
  %s4 = inlined_call_operand.vmem [shape: f32[7,32], index: 4, kind: input, shape index: {}]
  %s5 = inlined_call_operand.vmem [shape: f32[2,1,1], index: 5, kind: output, shape index: {}]
  %s6 = sld [smem:[#allocation0]]
  $region53: #{critic_forward.1} parent=0
    _
  %s8 = ssub.s32 1, %s6
  %s9 = scalar_select 0, %s8, %s6
  loop: start=0, step=1, limit=4
  $region2: #{critic_forward.1} parent=0 // loop_pre_header
    _
  $region3: #{critic_forward.1} parent=0 // loop_header
    %s11 = sphi 0, %s15
    %p12 = scmp.ge.s32.totalorder %s11, 4
    %s21 = sphi 0, %s23
    %s24 = sphi 0, %s21
    %s25 = sphi 0, %s24
    %s41 = sphi 0, %s25
    %s47 = sphi 0, %s49
    %s50 = sphi 0, %s47
    %s51 = sphi 0, %s50
    %s67 = sphi 0, %s51
    %s71 = sphi 0, %s71
    %s73 = sphi 0, %s71
    %s74 = sphi 0, %s73
    %s88 = sphi 0, %s74
    %s92 = sphi 0, %s92
    %s94 = sphi 0, %s92
    %s95 = sphi 0, %s94
    %s109 = sphi 0, %s95
    %s113 = sphi 0, %s113
    %s115 = sphi 0, %s113
    %s116 = sphi 0, %s115
    %s130 = sphi 0, %s116
    %s136 = sphi 0, %s138
    %s139 = sphi 0, %s136
    %s140 = sphi 0, %s139
    %s156 = sphi 0, %s140
  $region4: #{critic_forward.1} parent=0 // loop_header_branch
    %14 = sbr.rel (%p12) target = $region8
  $region5: #{critic_forward.1} parent=0 // loop_body
    %s16 = ssub.s32 %s11, 1
    %s17 = ssub.s32 %s11, 2
    %s18 = sadd.s32 %s11, 1
    %s19 = ssub.s32 %s11, %s18
    %p20 = scmp.eq.s32.totalorder %s19, 0
    %s22 = sadd.s32 %s21, 1
    %s23 = scalar_select %p20, %s21, %s22
    %p26 = pneg %p20
    %p27 = scmp.eq.s32.totalorder %s11, 1
    %p28 = por %p26, %p27
    %p29 = scmp.ne.s32.totalorder %s21, %s24
    %p30 = scmp.eq.s32.totalorder %s11, 0
    %p31 = por %p29, %p30
    %p32 = scmp.ne.s32.totalorder %s21, %s24
    %p33 = scmp.eq.s32.totalorder %s16, 1
    %p34 = por %p32, %p33
    %p35 = scmp.ne.s32.totalorder %s24, %s25
    %p36 = scmp.eq.s32.totalorder %s16, 0
    %p37 = por %p35, %p36
    %p38 = scmp.ne.s32.totalorder %s24, %s25
    %p39 = scmp.eq.s32.totalorder %s17, 1
    %p40 = por %p38, %p39
    %p42 = scmp.ne.s32.totalorder %s25, %s41
    %p43 = scmp.eq.s32.totalorder %s17, 0
    %p44 = por %p42, %p43
    %s45 = ssub.s32 %s11, %s18
    %p46 = scmp.eq.s32.totalorder %s45, 0
    %s48 = sadd.s32 %s47, 1
    %s49 = scalar_select %p46, %s47, %s48
    %p52 = pneg %p46
    %p53 = scmp.eq.s32.totalorder %s11, 1
    %p54 = por %p52, %p53
    %p55 = scmp.ne.s32.totalorder %s47, %s50
    %p56 = scmp.eq.s32.totalorder %s11, 0
    %p57 = por %p55, %p56
    %p58 = scmp.ne.s32.totalorder %s47, %s50
    %p59 = scmp.eq.s32.totalorder %s16, 1
    %p60 = por %p58, %p59
    %p61 = scmp.ne.s32.totalorder %s50, %s51
    %p62 = scmp.eq.s32.totalorder %s16, 0
    %p63 = por %p61, %p62
    %p64 = scmp.ne.s32.totalorder %s50, %s51
    %p65 = scmp.eq.s32.totalorder %s17, 1
    %p66 = por %p64, %p65
    %p68 = scmp.ne.s32.totalorder %s51, %s67
    %p69 = scmp.eq.s32.totalorder %s17, 0
    %p70 = por %p68, %p69
    %s72 = sadd.s32 %s71, 1
    %p75 = scmp.eq.s32.totalorder %s11, 1
    %p76 = scmp.ne.s32.totalorder %s71, %s73
    %p77 = scmp.eq.s32.totalorder %s11, 0
    %p78 = por %p76, %p77
    %p79 = scmp.ne.s32.totalorder %s71, %s73
    %p80 = scmp.eq.s32.totalorder %s16, 1
    %p81 = por %p79, %p80
    %p82 = scmp.ne.s32.totalorder %s73, %s74
    %p83 = scmp.eq.s32.totalorder %s16, 0
    %p84 = por %p82, %p83
    %p85 = scmp.ne.s32.totalorder %s73, %s74
    %p86 = scmp.eq.s32.totalorder %s17, 1
    %p87 = por %p85, %p86
    %p89 = scmp.ne.s32.totalorder %s74, %s88
    %p90 = scmp.eq.s32.totalorder %s17, 0
    %p91 = por %p89, %p90
    %s93 = sadd.s32 %s92, 1
    %p96 = scmp.eq.s32.totalorder %s11, 1
    %p97 = scmp.ne.s32.totalorder %s92, %s94
    %p98 = scmp.eq.s32.totalorder %s11, 0
    %p99 = por %p97, %p98
    %p100 = scmp.ne.s32.totalorder %s92, %s94
    %p101 = scmp.eq.s32.totalorder %s16, 1
    %p102 = por %p100, %p101
    %p103 = scmp.ne.s32.totalorder %s94, %s95
    %p104 = scmp.eq.s32.totalorder %s16, 0
    %p105 = por %p103, %p104
    %p106 = scmp.ne.s32.totalorder %s94, %s95
    %p107 = scmp.eq.s32.totalorder %s17, 1
    %p108 = por %p106, %p107
    %p110 = scmp.ne.s32.totalorder %s95, %s109
    %p111 = scmp.eq.s32.totalorder %s17, 0
    %p112 = por %p110, %p111
    %s114 = sadd.s32 %s113, 1
    %p117 = scmp.eq.s32.totalorder %s11, 1
    %p118 = scmp.ne.s32.totalorder %s113, %s115
    %p119 = scmp.eq.s32.totalorder %s11, 0
    %p120 = por %p118, %p119
    %p121 = scmp.ne.s32.totalorder %s113, %s115
    %p122 = scmp.eq.s32.totalorder %s16, 1
    %p123 = por %p121, %p122
    %p124 = scmp.ne.s32.totalorder %s115, %s116
    %p125 = scmp.eq.s32.totalorder %s16, 0
    %p126 = por %p124, %p125
    %p127 = scmp.ne.s32.totalorder %s115, %s116
    %p128 = scmp.eq.s32.totalorder %s17, 1
    %p129 = por %p127, %p128
    %p131 = scmp.ne.s32.totalorder %s116, %s130
    %p132 = scmp.eq.s32.totalorder %s17, 0
    %p133 = por %p131, %p132
    %s134 = ssub.s32 %s11, %s18
    %p135 = scmp.eq.s32.totalorder %s134, 0
    %s137 = sadd.s32 %s136, 1
    %s138 = scalar_select %p135, %s136, %s137
    %p141 = pneg %p135
    %p142 = scmp.eq.s32.totalorder %s11, 1
    %p143 = por %p141, %p142
    %p144 = scmp.ne.s32.totalorder %s136, %s139
    %p145 = scmp.eq.s32.totalorder %s11, 0
    %p146 = por %p144, %p145
    %p147 = scmp.ne.s32.totalorder %s136, %s139
    %p148 = scmp.eq.s32.totalorder %s16, 1
    %p149 = por %p147, %p148
    %p150 = scmp.ne.s32.totalorder %s139, %s140
    %p151 = scmp.eq.s32.totalorder %s16, 0
    %p152 = por %p150, %p151
    %p153 = scmp.ne.s32.totalorder %s139, %s140
    %p154 = scmp.eq.s32.totalorder %s17, 1
    %p155 = por %p153, %p154
    %p157 = scmp.ne.s32.totalorder %s140, %s156
    %p158 = scmp.eq.s32.totalorder %s17, 0
    %p159 = por %p157, %p158
    %p160 = scmp.le.s32.totalorder 1, %s11
    %p161 = scmp.lt.s32.totalorder %s11, 3
    %p162 = pnand %p160, %p161
    %p163 = pneg %p162
    // Predicated region
    $region9: #{critic_forward.1} parent=5 // pred_check
      _
    $region10: #{critic_forward.1} parent=5 // pred_check_branch
      %165 = sbr.rel (%p162) target = $region12
    $region11: #{critic_forward.1} parent=5 // pred_region
      %s166 = ssub.s32 %s11, 1
      // Predicated region
      $region13: #{critic_forward.1} parent=11 // pred_check
        %p167 = pneg %p84
      $region14: #{critic_forward.1} parent=11 // pred_check_branch
        %169 = sbr.rel (%p167) target = $region16
      $region15: #{critic_forward.1} parent=11 // pred_region
        _
      $region16: #{critic_forward.1} parent=11 // pred_fallthru
        _
      // Predicated region
      $region17: #{critic_forward.1} parent=11 // pred_check
        %p170 = pneg %p105
      $region18: #{critic_forward.1} parent=11 // pred_check_branch
        %172 = sbr.rel (%p170) target = $region20
      $region19: #{critic_forward.1} parent=11 // pred_region
        _
      $region20: #{critic_forward.1} parent=11 // pred_fallthru
        _
      // Predicated region
      $region21: #{critic_forward.1} parent=11 // pred_check
        %p173 = pneg %p126
      $region22: #{critic_forward.1} parent=11 // pred_check_branch
        %175 = sbr.rel (%p173) target = $region24
      $region23: #{critic_forward.1} parent=11 // pred_region
        _
      $region24: #{critic_forward.1} parent=11 // pred_fallthru
        _
    $region12: #{critic_forward.1} parent=5 // pred_fallthru
      _
    %p176 = scmp.lt.s32.totalorder %s11, 2
    // Predicated region
    $region25: #{critic_forward.1} parent=5 // pred_check
      %p177 = pneg %p176
    $region26: #{critic_forward.1} parent=5 // pred_check_branch
      %179 = sbr.rel (%p177) target = $region28
    $region27: #{critic_forward.1} parent=5 // pred_region
      // Predicated region
      $region29: #{critic_forward.1} parent=27 // pred_check
        %p180 = pneg %p31
      $region30: #{critic_forward.1} parent=27 // pred_check_branch
        %182 = sbr.rel (%p180) target = $region32
      $region31: #{critic_forward.1} parent=27 // pred_region
        %p183 = scmp.lt.s32.totalorder %s11, 1
        %s184 = scalar_select %p183, %s11, 1
        %s185 = smul.addr %s184, 8
        %s186 = scalar_lea.vmem %s0, %s185
      $region32: #{critic_forward.1} parent=27 // pred_fallthru
        _
      // Predicated region
      $region33: #{critic_forward.1} parent=27 // pred_check
        %p187 = pneg %p57
      $region34: #{critic_forward.1} parent=27 // pred_check_branch
        %189 = sbr.rel (%p187) target = $region36
      $region35: #{critic_forward.1} parent=27 // pred_region
        %p190 = scmp.lt.s32.totalorder %s11, 1
        %s191 = scalar_select %p190, %s11, 1
        %s192 = smul.addr %s191, 4
        %s193 = smul.addr %s192, 8
        %s194 = scalar_lea.vmem %s1, %s193
      $region36: #{critic_forward.1} parent=27 // pred_fallthru
        _
    $region28: #{critic_forward.1} parent=5 // pred_fallthru
      _
    %p195 = scmp.le.s32.totalorder 1, %s11
    %p196 = scmp.lt.s32.totalorder %s11, 3
    %p197 = pnand %p195, %p196
    %p198 = pneg %p197
    // Predicated region
    $region37: #{critic_forward.1} parent=5 // pred_check
      _
    $region38: #{critic_forward.1} parent=5 // pred_check_branch
      %200 = sbr.rel (%p197) target = $region40
    $region39: #{critic_forward.1} parent=5 // pred_region
      %s201 = ssub.s32 %s11, 1
      %p202 = scmp.lt.s32.totalorder %s16, 1
      %s203 = scalar_select %p202, %s16, 1
      %s204 = smul.addr %s203, 8
      %s205 = scalar_lea.vmem %s0, %s204
      %p206 = pneg %p37
      %p207 = pneg %p34
      %p208 = scmp.lt.s32.totalorder %s16, 1
      %s209 = scalar_select %p208, %s16, 1
      %s210 = smul.addr %s209, 4
      %s211 = smul.addr %s210, 8
      %s212 = scalar_lea.vmem %s1, %s211
      %p213 = pneg %p63
      %p214 = pneg %p60
      %p215 = pneg %p84
      %p216 = pneg %p81
      %p217 = pneg %p105
      %p218 = pneg %p102
      %p219 = pneg %p126
      %p220 = pneg %p123
      %p221 = pneg %p152
      %p222 = pneg %p149
      %p223 = scmp.lt.s32.totalorder %s16, 1
      %s224 = scalar_select %p223, %s16, 1
      %s225 = scalar_lea.vmem %s5, %s224
      %p226 = scmp.lt.s32.totalorder %s16, 1
      %s227 = scalar_select %p226, %s16, 1
      %s228 = smul.addr %s227, 8
      %s229 = scalar_lea.vmem %s0, %s228
      %p230 = scmp.lt.s32.totalorder %s16, 1
      %s231 = scalar_select %p230, %s16, 1
      %s232 = smul.addr %s231, 4
      %s233 = smul.addr %s232, 8
      %s234 = scalar_lea.vmem %s1, %s233
      %p235 = scmp.lt.s32.totalorder %s16, 1
      %s236 = scalar_select %p235, %s16, 1
      %s237 = scalar_lea.vmem %s5, %s236
      %v239 = vld [vmem:[%s229] sm:$0xff]
      %v240 = vld [vmem:[%s234] sm:$0xff]
      %v241 = vld [vmem:[%s234 + $0x8] sm:$0xff]
      %v242 = vld [vmem:[%s234 + $0x10] sm:$0xff]
      %v243 = vld [vmem:[%s234 + $0x18] sm:$0xff]
      %v244 = vld [vmem:[%s2] sm:$0xff]
      %v245 = vld [vmem:[%s2 + $0x8] sm:$0xff]
      %v246 = vld [vmem:[%s2 + $0x10] sm:$0xff]
      %v247 = vld [vmem:[%s2 + $0x18] sm:$0xff]
      %v248 = vld [vmem:[%s4] sm:$0x1]
      %v249 = vmul.f32 %v239, %v239
      %vm250 = vcmask 261120
      %v251 = vsel %vm250, %v249, 0.0
      %252 = vadd.xlane.f32.xlu0 %v251
      %v253 = vpop.xlane.xlu0 %252
      %v254 = vrcp.pop 32.0
      %v255 = vmul.f32 32.0, %v254
      %v256 = vsub.f32 1.0, %v255
      %v257 = vmul.f32 %v254, %v256
      %v258 = vadd.f32 %v254, %v257
      %vm259 = vweird.f32 %v254
      %v260 = vsel %vm259, %v254, %v258
      %v261 = vmul.f32 %v253, %v260
      %v262 = vadd.f32 %v261, 1e-06
      %v263 = vrsqrt.pop %v262
      %v264 = vmul.f32 %v263, %v262
      %v265 = vmul.f32 %v264, %v263
      %v266 = vmul.f32 0.5, %v265
      %v267 = vsub.f32 1.5, %v266
      %v268 = vmul.f32 %v263, %v267
      %vm269 = vweird.f32 %v262
      %vm270 = vweird.f32 %v263
      %vm271 = vmor %vm269, %vm270
      %v272 = vsel %vm271, %v263, %v268
      %v273 = vmul.f32 %v239, %v272
      %v274 = vperm.slane %v248, 0
      %v275 = vmul.f32 %v273, %v274
      %v276 = vpack.c.bf16 %v275, %v275
      %v281 = vunpack.c.l.b16 %v244
      %v282 = vunpack.c.l.b16 %v245
      %v283 = vunpack.c.l.b16 %v246
      %v284 = vunpack.c.l.b16 %v247
      %v285 = vpack.c.b16 %v282, %v281
      %v286 = vpack.c.b16 %v284, %v283
      %v290 = vsel %vm250, %v276, 0
      %292 = vmatpush.bf16.msra.mxu0 0
      %293 = vmatpush.bf16.msra.mxu0 0
      %294 = vmatpush.bf16.msra.mxu0 0
      %295 = vmatpush.bf16.msra.mxu0 0
      %296 = vmatpush.bf16.msra.mxu0 0
      %297 = vmatpush.bf16.msra.mxu0 0
      %298 = vmatpush.bf16.msra.mxu0 %v286
      %299 = vmatpush.bf16.msra.mxu0 %v285
      %300 = vmatmul.bf16.gmra.mxu0 %v290
      %v301 = vpop.f32.mrf.mxu0
      %v302 = vadd.f32 0.0, %v301
      %v303 = vpop.f32.mrf.mxu0
      %304 = vdwg.mxu0
      %306 = vrot.lane.b32.xlu0 %v302, 120
      %v307 = vpop.permute.xlu0 %306
      %309 = vrot.lane.b32.xlu0 %v302, 112
      %v310 = vpop.permute.xlu0 %309
      %312 = vrot.lane.b32.xlu0 %v302, 104
      %v313 = vpop.permute.xlu0 %312
      %v315 = vpack.c.bf16 %v307, %v302
      %v316 = vpack.c.bf16 %v313, %v310
      %319 = vrot.lane.b32.xlu0 %v315, 96
      %v320 = vpop.permute.xlu0 %319
      %321 = vrot.lane.b32.xlu0 %v316, 96
      %v322 = vpop.permute.xlu0 %321
      %vm323 = vcmask 64512
      %v325 = vsel %vm323, %v315, 0
      %v328 = vsel %vm323, %v316, 0
      %v331 = vsel %vm323, %v320, 0
      %v334 = vsel %vm323, %v322, 0
      %336 = vmatpush.bf16.xpose.msra.mxu0 0
      %337 = vmatpush.bf16.xpose.msra.mxu0 0
      %338 = vmatpush.bf16.xpose.msra.mxu0 0
      %339 = vmatpush.bf16.xpose.msra.mxu0 0
      %340 = vmatpush.bf16.xpose.msra.mxu0 0
      %341 = vmatpush.bf16.xpose.msra.mxu0 0
      %342 = vmatpush.bf16.xpose.msra.mxu0 %v334
      %343 = vmatpush.bf16.xpose.msra.mxu0 %v331
      %344 = vmatmul.bf16.gmra.mxu0 %v325
      %v345 = vpop.f32.mrf.mxu0
      %v346 = vadd.f32 %v240, %v345
      %v347 = vpop.f32.mrf.mxu0
      %v348 = vadd.f32 %v241, %v347
      %349 = vmatmul.bf16.gmra.mxu0 %v328
      %v350 = vpop.f32.mrf.mxu0
      %v351 = vadd.f32 %v242, %v350
      %v352 = vpop.f32.mrf.mxu0
      %v353 = vadd.f32 %v243, %v352
      %354 = vdwg.mxu0
      %v355 = vsel %vm250, %v346, -inf
      %356 = vmax.xlane.f32.xlu0 %v355
      %v357 = vpop.xlane.xlu0 %356
      %v358 = vsel %vm250, %v348, -inf
      %359 = vmax.xlane.f32.xlu0 %v358
      %v360 = vpop.xlane.xlu0 %359
      %v361 = vsel %vm250, %v351, -inf
      %362 = vmax.xlane.f32.xlu0 %v361
      %v363 = vpop.xlane.xlu0 %362
      %v364 = vsel %vm250, %v353, -inf
      %365 = vmax.xlane.f32.xlu0 %v364
      %v366 = vpop.xlane.xlu0 %365
      %v367 = vsub.f32 %v346, %v357
      %v368 = vsub.f32 %v348, %v360
      %v369 = vsub.f32 %v351, %v363
      %v370 = vsub.f32 %v353, %v366
      %v371 = vmul.f32 %v367, 1.442695
      %v372 = vpow.pop %v371
      %v373 = vmul.f32 %v368, 1.442695
      %v374 = vpow.pop %v373
      %v375 = vmul.f32 %v369, 1.442695
      %v376 = vpow.pop %v375
      %v377 = vmul.f32 %v370, 1.442695
      %v378 = vpow.pop %v377
      %v379 = vsel %vm250, %v372, 0.0
      %380 = vadd.xlane.f32.xlu0 %v379
      %v381 = vpop.xlane.xlu0 %380
      %v382 = vsel %vm250, %v374, 0.0
      %383 = vadd.xlane.f32.xlu0 %v382
      %v384 = vpop.xlane.xlu0 %383
      %v385 = vsel %vm250, %v376, 0.0
      %386 = vadd.xlane.f32.xlu0 %v385
      %v387 = vpop.xlane.xlu0 %386
      %v388 = vsel %vm250, %v378, 0.0
      %389 = vadd.xlane.f32.xlu0 %v388
      %v390 = vpop.xlane.xlu0 %389
      %v391 = vrcp.pop %v381
      %v392 = vrcp.pop %v384
      %v393 = vrcp.pop %v387
      %v394 = vrcp.pop %v390
      %v395 = vmul.f32 %v372, %v391
      %v396 = vmul.f32 %v374, %v392
      %v397 = vmul.f32 %v376, %v393
      %v398 = vmul.f32 %v378, %v394
      %v399 = vpack.c.bf16 %v396, %v395
      %v400 = vpack.c.bf16 %v398, %v397
      %401 = vrot.lane.b32.xlu0 %v315, 64
      %v402 = vpop.permute.xlu0 %401
      %403 = vrot.lane.b32.xlu0 %v316, 64
      %v404 = vpop.permute.xlu0 %403
      %v408 = vsel %vm250, %v399, 0
      %v411 = vsel %vm250, %v400, 0
      %413 = vmatpush.bf16.msra.mxu0 0
      %414 = vmatpush.bf16.msra.mxu0 0
      %415 = vmatpush.bf16.msra.mxu0 0
      %416 = vmatpush.bf16.msra.mxu0 0
      %417 = vmatpush.bf16.msra.mxu0 0
      %418 = vmatpush.bf16.msra.mxu0 0
      %419 = vmatpush.bf16.msra.mxu0 %v404
      %420 = vmatpush.bf16.msra.mxu0 %v402
      %421 = vmatmul.bf16.gmra.mxu0 %v408
      %v422 = vpop.f32.mrf.mxu0
      %v423 = vadd.f32 0.0, %v422
      %v424 = vpop.f32.mrf.mxu0
      %v425 = vadd.f32 0.0, %v424
      %426 = vmatmul.bf16.gmra.mxu0 %v411
      %v427 = vpop.f32.mrf.mxu0
      %v428 = vadd.f32 0.0, %v427
      %v429 = vpop.f32.mrf.mxu0
      %v430 = vadd.f32 0.0, %v429
      %431 = vdwg.mxu0
      %433 = vrot.lane.b32.xlu0 %v425, 8
      %v434 = vpop.permute.xlu0 %433
      %437 = vrot.lane.b32.xlu0 %v428, 16
      %v438 = vpop.permute.xlu0 %437
      %441 = vrot.lane.b32.xlu0 %v430, 24
      %v442 = vpop.permute.xlu0 %441
      %v444 = vsel %vm323, %v423, %v434
      %vm445 = vcmask 130048
      %v446 = vsel %vm445, %v444, %v438
      %vm447 = vcmask 195584
      %v448 = vsel %vm447, %v446, %v442
      %v449 = vpack.c.bf16 %v448, %v448
      %450 = vrot.lane.b32.xlu0 %v285, 32
      %v451 = vpop.permute.xlu0 %450
      %452 = vrot.lane.b32.xlu0 %v286, 32
      %v453 = vpop.permute.xlu0 %452
      %v457 = vsel %vm250, %v449, 0
      %459 = vmatpush.bf16.msra.mxu0 0
      %460 = vmatpush.bf16.msra.mxu0 0
      %461 = vmatpush.bf16.msra.mxu0 0
      %462 = vmatpush.bf16.msra.mxu0 0
      %463 = vmatpush.bf16.msra.mxu0 0
      %464 = vmatpush.bf16.msra.mxu0 0
      %465 = vmatpush.bf16.msra.mxu0 %v453
      %466 = vmatpush.bf16.msra.mxu0 %v451
      %467 = vmatmul.bf16.gmra.mxu0 %v457
      %v468 = vpop.f32.mrf.mxu0
      %v469 = vadd.f32 0.0, %v468
      %v470 = vpop.f32.mrf.mxu0
      %471 = vdwg.mxu0
      %v472 = vadd.f32 %v239, %v469
      %v473 = vld [vmem:[%s4 + $0x2] sm:$0x1]
      %v474 = vmul.f32 %v472, %v472
      %v475 = vsel %vm250, %v474, 0.0
      %476 = vadd.xlane.f32.xlu0 %v475
      %v477 = vpop.xlane.xlu0 %476
      %v478 = vmul.f32 %v477, %v260
      %v479 = vadd.f32 %v478, 1e-06
      %v480 = vrsqrt.pop %v479
      %v481 = vmul.f32 %v480, %v479
      %v482 = vmul.f32 %v481, %v480
      %v483 = vmul.f32 0.5, %v482
      %v484 = vsub.f32 1.5, %v483
      %v485 = vmul.f32 %v480, %v484
      %vm486 = vweird.f32 %v479
      %vm487 = vweird.f32 %v480
      %vm488 = vmor %vm486, %vm487
      %v489 = vsel %vm488, %v480, %v485
      %v490 = vmul.f32 %v472, %v489
      %v491 = vperm.slane %v473, 0
      %v492 = vmul.f32 %v490, %v491
      %v493 = vpack.c.bf16 %v492, %v492
      %v494 = vunpack.c.h.b16 %v244
      %v495 = vunpack.c.h.b16 %v245
      %v496 = vunpack.c.h.b16 %v246
      %v497 = vunpack.c.h.b16 %v247
      %v498 = vpack.c.b16 %v495, %v494
      %v499 = vpack.c.b16 %v497, %v496
      %v503 = vsel %vm250, %v493, 0
      %505 = vmatpush.bf16.msra.mxu0 0
      %506 = vmatpush.bf16.msra.mxu0 0
      %507 = vmatpush.bf16.msra.mxu0 0
      %508 = vmatpush.bf16.msra.mxu0 0
      %509 = vmatpush.bf16.msra.mxu0 0
      %510 = vmatpush.bf16.msra.mxu0 0
      %511 = vmatpush.bf16.msra.mxu0 %v499
      %512 = vmatpush.bf16.msra.mxu0 %v498
      %513 = vmatmul.bf16.gmra.mxu0 %v503
      %v514 = vpop.f32.mrf.mxu0
      %v515 = vadd.f32 0.0, %v514
      %v516 = vpop.f32.mrf.mxu0
      %517 = vdwg.mxu0
      %v518 = vmul.f32 %v515, %v515
      %v519 = vmul.f32 %v515, %v518
      %v520 = vmul.f32 %v519, 0.044715
      %v521 = vadd.f32 %v515, %v520
      %v522 = vmul.f32 %v521, 0.7978846
      %v523 = vtanh.pop %v522
      %v524 = vadd.f32 %v523, 1.0
      %v525 = vmul.f32 %v524, 0.5
      %v526 = vmul.f32 %v515, %v525
      %528 = vrot.lane.b32.xlu0 %v515, 64
      %v529 = vpop.permute.xlu0 %528
      %v531 = vmul.f32 %v526, %v529
      %v532 = vpack.c.bf16 %v531, %v531
      %v533 = vld [vmem:[%s3] sm:$0xf]
      %v534 = vld [vmem:[%s3 + $0x4] sm:$0xf]
      %v535 = vld [vmem:[%s3 + $0x8] sm:$0xf]
      %v536 = vld [vmem:[%s3 + $0xc] sm:$0xf]
      %v537 = vld [vmem:[%s3 + $0x10] sm:$0xf]
      %v538 = vld [vmem:[%s3 + $0x14] sm:$0xf]
      %v539 = vld [vmem:[%s3 + $0x18] sm:$0xf]
      %v540 = vld [vmem:[%s3 + $0x1c] sm:$0xf]
      %v549 = vunpack.c.l.b16 %v533
      %v550 = vunpack.c.l.b16 %v534
      %v551 = vunpack.c.l.b16 %v535
      %v552 = vunpack.c.l.b16 %v536
      %v553 = vunpack.c.l.b16 %v537
      %v554 = vunpack.c.l.b16 %v538
      %v555 = vunpack.c.l.b16 %v539
      %v556 = vunpack.c.l.b16 %v540
      %v557 = vpack.c.b16 %v550, %v549
      %v558 = vpack.c.b16 %v552, %v551
      %v559 = vpack.c.b16 %v554, %v553
      %v560 = vpack.c.b16 %v556, %v555
      %vm565 = vcmask 523264
      %v567 = vsel %vm565, %v532, 0
      %569 = vmatpush.bf16.msra.mxu0 0
      %570 = vmatpush.bf16.msra.mxu0 0
      %571 = vmatpush.bf16.msra.mxu0 0
      %572 = vmatpush.bf16.msra.mxu0 0
      %573 = vmatpush.bf16.msra.mxu0 %v560
      %574 = vmatpush.bf16.msra.mxu0 %v559
      %575 = vmatpush.bf16.msra.mxu0 %v558
      %576 = vmatpush.bf16.msra.mxu0 %v557
      %577 = vmatmul.bf16.gmra.mxu0 %v567
      %v578 = vpop.f32.mrf.mxu0
      %v579 = vadd.f32 0.0, %v578
      %v580 = vpop.f32.mrf.mxu0
      %581 = vdwg.mxu0
      %v582 = vadd.f32 %v472, %v579
      %s583 = scalar_lea.vmem %s2, 32
      %v584 = vld [vmem:[%s583] sm:$0xff]
      %v585 = vld [vmem:[%s583 + $0x8] sm:$0xff]
      %v586 = vld [vmem:[%s583 + $0x10] sm:$0xff]
      %v587 = vld [vmem:[%s583 + $0x18] sm:$0xff]
      %v588 = vld [vmem:[%s4 + $0x1] sm:$0x1]
      %v589 = vmul.f32 %v582, %v582
      %v590 = vsel %vm250, %v589, 0.0
      %591 = vadd.xlane.f32.xlu0 %v590
      %v592 = vpop.xlane.xlu0 %591
      %v593 = vmul.f32 %v592, %v260
      %v594 = vadd.f32 %v593, 1e-06
      %v595 = vrsqrt.pop %v594
      %v596 = vmul.f32 %v595, %v594
      %v597 = vmul.f32 %v596, %v595
      %v598 = vmul.f32 0.5, %v597
      %v599 = vsub.f32 1.5, %v598
      %v600 = vmul.f32 %v595, %v599
      %vm601 = vweird.f32 %v594
      %vm602 = vweird.f32 %v595
      %vm603 = vmor %vm601, %vm602
      %v604 = vsel %vm603, %v595, %v600
      %v605 = vmul.f32 %v582, %v604
      %v606 = vperm.slane %v588, 0
      %v607 = vmul.f32 %v605, %v606
      %v608 = vpack.c.bf16 %v607, %v607
      %v613 = vunpack.c.l.b16 %v584
      %v614 = vunpack.c.l.b16 %v585
      %v615 = vunpack.c.l.b16 %v586
      %v616 = vunpack.c.l.b16 %v587
      %v617 = vpack.c.b16 %v614, %v613
      %v618 = vpack.c.b16 %v616, %v615
      %v622 = vsel %vm250, %v608, 0
      %624 = vmatpush.bf16.msra.mxu0 0
      %625 = vmatpush.bf16.msra.mxu0 0
      %626 = vmatpush.bf16.msra.mxu0 0
      %627 = vmatpush.bf16.msra.mxu0 0
      %628 = vmatpush.bf16.msra.mxu0 0
      %629 = vmatpush.bf16.msra.mxu0 0
      %630 = vmatpush.bf16.msra.mxu0 %v618
      %631 = vmatpush.bf16.msra.mxu0 %v617
      %632 = vmatmul.bf16.gmra.mxu0 %v622
      %v633 = vpop.f32.mrf.mxu0
      %v634 = vadd.f32 0.0, %v633
      %v635 = vpop.f32.mrf.mxu0
      %636 = vdwg.mxu0
      %638 = vrot.lane.b32.xlu0 %v634, 120
      %v639 = vpop.permute.xlu0 %638
      %641 = vrot.lane.b32.xlu0 %v634, 112
      %v642 = vpop.permute.xlu0 %641
      %644 = vrot.lane.b32.xlu0 %v634, 104
      %v645 = vpop.permute.xlu0 %644
      %v647 = vpack.c.bf16 %v639, %v634
      %v648 = vpack.c.bf16 %v645, %v642
      %651 = vrot.lane.b32.xlu0 %v647, 96
      %v652 = vpop.permute.xlu0 %651
      %653 = vrot.lane.b32.xlu0 %v648, 96
      %v654 = vpop.permute.xlu0 %653
      %v656 = vsel %vm323, %v647, 0
      %v659 = vsel %vm323, %v648, 0
      %v662 = vsel %vm323, %v652, 0
      %v665 = vsel %vm323, %v654, 0
      %667 = vmatpush.bf16.xpose.msra.mxu0 0
      %668 = vmatpush.bf16.xpose.msra.mxu0 0
      %669 = vmatpush.bf16.xpose.msra.mxu0 0
      %670 = vmatpush.bf16.xpose.msra.mxu0 0
      %671 = vmatpush.bf16.xpose.msra.mxu0 0
      %672 = vmatpush.bf16.xpose.msra.mxu0 0
      %673 = vmatpush.bf16.xpose.msra.mxu0 %v665
      %674 = vmatpush.bf16.xpose.msra.mxu0 %v662
      %675 = vmatmul.bf16.gmra.mxu0 %v656
      %v676 = vpop.f32.mrf.mxu0
      %v677 = vadd.f32 %v240, %v676
      %v678 = vpop.f32.mrf.mxu0
      %v679 = vadd.f32 %v241, %v678
      %680 = vmatmul.bf16.gmra.mxu0 %v659
      %v681 = vpop.f32.mrf.mxu0
      %v682 = vadd.f32 %v242, %v681
      %v683 = vpop.f32.mrf.mxu0
      %v684 = vadd.f32 %v243, %v683
      %685 = vdwg.mxu0
      %v686 = vsel %vm250, %v677, -inf
      %687 = vmax.xlane.f32.xlu0 %v686
      %v688 = vpop.xlane.xlu0 %687
      %v689 = vsel %vm250, %v679, -inf
      %690 = vmax.xlane.f32.xlu0 %v689
      %v691 = vpop.xlane.xlu0 %690
      %v692 = vsel %vm250, %v682, -inf
      %693 = vmax.xlane.f32.xlu0 %v692
      %v694 = vpop.xlane.xlu0 %693
      %v695 = vsel %vm250, %v684, -inf
      %696 = vmax.xlane.f32.xlu0 %v695
      %v697 = vpop.xlane.xlu0 %696
      %v698 = vsub.f32 %v677, %v688
      %v699 = vsub.f32 %v679, %v691
      %v700 = vsub.f32 %v682, %v694
      %v701 = vsub.f32 %v684, %v697
      %v702 = vmul.f32 %v698, 1.442695
      %v703 = vpow.pop %v702
      %v704 = vmul.f32 %v699, 1.442695
      %v705 = vpow.pop %v704
      %v706 = vmul.f32 %v700, 1.442695
      %v707 = vpow.pop %v706
      %v708 = vmul.f32 %v701, 1.442695
      %v709 = vpow.pop %v708
      %v710 = vsel %vm250, %v703, 0.0
      %711 = vadd.xlane.f32.xlu0 %v710
      %v712 = vpop.xlane.xlu0 %711
      %v713 = vsel %vm250, %v705, 0.0
      %714 = vadd.xlane.f32.xlu0 %v713
      %v715 = vpop.xlane.xlu0 %714
      %v716 = vsel %vm250, %v707, 0.0
      %717 = vadd.xlane.f32.xlu0 %v716
      %v718 = vpop.xlane.xlu0 %717
      %v719 = vsel %vm250, %v709, 0.0
      %720 = vadd.xlane.f32.xlu0 %v719
      %v721 = vpop.xlane.xlu0 %720
      %v722 = vrcp.pop %v712
      %v723 = vrcp.pop %v715
      %v724 = vrcp.pop %v718
      %v725 = vrcp.pop %v721
      %v726 = vmul.f32 %v703, %v722
      %v727 = vmul.f32 %v705, %v723
      %v728 = vmul.f32 %v707, %v724
      %v729 = vmul.f32 %v709, %v725
      %v730 = vpack.c.bf16 %v727, %v726
      %v731 = vpack.c.bf16 %v729, %v728
      %732 = vrot.lane.b32.xlu0 %v647, 64
      %v733 = vpop.permute.xlu0 %732
      %734 = vrot.lane.b32.xlu0 %v648, 64
      %v735 = vpop.permute.xlu0 %734
      %v739 = vsel %vm250, %v730, 0
      %v742 = vsel %vm250, %v731, 0
      %744 = vmatpush.bf16.msra.mxu0 0
      %745 = vmatpush.bf16.msra.mxu0 0
      %746 = vmatpush.bf16.msra.mxu0 0
      %747 = vmatpush.bf16.msra.mxu0 0
      %748 = vmatpush.bf16.msra.mxu0 0
      %749 = vmatpush.bf16.msra.mxu0 0
      %750 = vmatpush.bf16.msra.mxu0 %v735
      %751 = vmatpush.bf16.msra.mxu0 %v733
      %752 = vmatmul.bf16.gmra.mxu0 %v739
      %v753 = vpop.f32.mrf.mxu0
      %v754 = vadd.f32 0.0, %v753
      %v755 = vpop.f32.mrf.mxu0
      %v756 = vadd.f32 0.0, %v755
      %757 = vmatmul.bf16.gmra.mxu0 %v742
      %v758 = vpop.f32.mrf.mxu0
      %v759 = vadd.f32 0.0, %v758
      %v760 = vpop.f32.mrf.mxu0
      %v761 = vadd.f32 0.0, %v760
      %762 = vdwg.mxu0
      %764 = vrot.lane.b32.xlu0 %v756, 8
      %v765 = vpop.permute.xlu0 %764
      %768 = vrot.lane.b32.xlu0 %v759, 16
      %v769 = vpop.permute.xlu0 %768
      %772 = vrot.lane.b32.xlu0 %v761, 24
      %v773 = vpop.permute.xlu0 %772
      %v775 = vsel %vm323, %v754, %v765
      %v776 = vsel %vm445, %v775, %v769
      %v777 = vsel %vm447, %v776, %v773
      %v778 = vpack.c.bf16 %v777, %v777
      %779 = vrot.lane.b32.xlu0 %v617, 32
      %v780 = vpop.permute.xlu0 %779
      %781 = vrot.lane.b32.xlu0 %v618, 32
      %v782 = vpop.permute.xlu0 %781
      %v786 = vsel %vm250, %v778, 0
      %788 = vmatpush.bf16.msra.mxu0 0
      %789 = vmatpush.bf16.msra.mxu0 0
      %790 = vmatpush.bf16.msra.mxu0 0
      %791 = vmatpush.bf16.msra.mxu0 0
      %792 = vmatpush.bf16.msra.mxu0 0
      %793 = vmatpush.bf16.msra.mxu0 0
      %794 = vmatpush.bf16.msra.mxu0 %v782
      %795 = vmatpush.bf16.msra.mxu0 %v780
      %796 = vmatmul.bf16.gmra.mxu0 %v786
      %v797 = vpop.f32.mrf.mxu0
      %v798 = vadd.f32 0.0, %v797
      %v799 = vpop.f32.mrf.mxu0
      %800 = vdwg.mxu0
      %v801 = vadd.f32 %v582, %v798
      %v802 = vld [vmem:[%s4 + $0x3] sm:$0x1]
      %v803 = vmul.f32 %v801, %v801
      %v804 = vsel %vm250, %v803, 0.0
      %805 = vadd.xlane.f32.xlu0 %v804
      %v806 = vpop.xlane.xlu0 %805
      %v807 = vmul.f32 %v806, %v260
      %v808 = vadd.f32 %v807, 1e-06
      %v809 = vrsqrt.pop %v808
      %v810 = vmul.f32 %v809, %v808
      %v811 = vmul.f32 %v810, %v809
      %v812 = vmul.f32 0.5, %v811
      %v813 = vsub.f32 1.5, %v812
      %v814 = vmul.f32 %v809, %v813
      %vm815 = vweird.f32 %v808
      %vm816 = vweird.f32 %v809
      %vm817 = vmor %vm815, %vm816
      %v818 = vsel %vm817, %v809, %v814
      %v819 = vmul.f32 %v801, %v818
      %v820 = vperm.slane %v802, 0
      %v821 = vmul.f32 %v819, %v820
      %v822 = vpack.c.bf16 %v821, %v821
      %v823 = vunpack.c.h.b16 %v584
      %v824 = vunpack.c.h.b16 %v585
      %v825 = vunpack.c.h.b16 %v586
      %v826 = vunpack.c.h.b16 %v587
      %v827 = vpack.c.b16 %v824, %v823
      %v828 = vpack.c.b16 %v826, %v825
      %v832 = vsel %vm250, %v822, 0
      %834 = vmatpush.bf16.msra.mxu0 0
      %835 = vmatpush.bf16.msra.mxu0 0
      %836 = vmatpush.bf16.msra.mxu0 0
      %837 = vmatpush.bf16.msra.mxu0 0
      %838 = vmatpush.bf16.msra.mxu0 0
      %839 = vmatpush.bf16.msra.mxu0 0
      %840 = vmatpush.bf16.msra.mxu0 %v828
      %841 = vmatpush.bf16.msra.mxu0 %v827
      %842 = vmatmul.bf16.gmra.mxu0 %v832
      %v843 = vpop.f32.mrf.mxu0
      %v844 = vadd.f32 0.0, %v843
      %v845 = vpop.f32.mrf.mxu0
      %846 = vdwg.mxu0
      %v847 = vmul.f32 %v844, %v844
      %v848 = vmul.f32 %v844, %v847
      %v849 = vmul.f32 %v848, 0.044715
      %v850 = vadd.f32 %v844, %v849
      %v851 = vmul.f32 %v850, 0.7978846
      %v852 = vtanh.pop %v851
      %v853 = vadd.f32 %v852, 1.0
      %v854 = vmul.f32 %v853, 0.5
      %v855 = vmul.f32 %v844, %v854
      %857 = vrot.lane.b32.xlu0 %v844, 64
      %v858 = vpop.permute.xlu0 %857
      %v860 = vmul.f32 %v855, %v858
      %v861 = vpack.c.bf16 %v860, %v860
      %s862 = scalar_lea.vmem %s3, 32
      %v863 = vld [vmem:[%s862] sm:$0xf]
      %v864 = vld [vmem:[%s862 + $0x4] sm:$0xf]
      %v865 = vld [vmem:[%s862 + $0x8] sm:$0xf]
      %v866 = vld [vmem:[%s862 + $0xc] sm:$0xf]
      %v867 = vld [vmem:[%s862 + $0x10] sm:$0xf]
      %v868 = vld [vmem:[%s862 + $0x14] sm:$0xf]
      %v869 = vld [vmem:[%s862 + $0x18] sm:$0xf]
      %v870 = vld [vmem:[%s862 + $0x1c] sm:$0xf]
      %v879 = vunpack.c.l.b16 %v863
      %v880 = vunpack.c.l.b16 %v864
      %v881 = vunpack.c.l.b16 %v865
      %v882 = vunpack.c.l.b16 %v866
      %v883 = vunpack.c.l.b16 %v867
      %v884 = vunpack.c.l.b16 %v868
      %v885 = vunpack.c.l.b16 %v869
      %v886 = vunpack.c.l.b16 %v870
      %v887 = vpack.c.b16 %v880, %v879
      %v888 = vpack.c.b16 %v882, %v881
      %v889 = vpack.c.b16 %v884, %v883
      %v890 = vpack.c.b16 %v886, %v885
      %v896 = vsel %vm565, %v861, 0
      %898 = vmatpush.bf16.msra.mxu0 0
      %899 = vmatpush.bf16.msra.mxu0 0
      %900 = vmatpush.bf16.msra.mxu0 0
      %901 = vmatpush.bf16.msra.mxu0 0
      %902 = vmatpush.bf16.msra.mxu0 %v890
      %903 = vmatpush.bf16.msra.mxu0 %v889
      %904 = vmatpush.bf16.msra.mxu0 %v888
      %905 = vmatpush.bf16.msra.mxu0 %v887
      %906 = vmatmul.bf16.gmra.mxu0 %v896
      %v907 = vpop.f32.mrf.mxu0
      %v908 = vadd.f32 0.0, %v907
      %v909 = vpop.f32.mrf.mxu0
      %910 = vdwg.mxu0
      %v911 = vadd.f32 %v801, %v908
      %v912 = vld [vmem:[%s4 + $0x4] sm:$0x1]
      %v913 = vmul.f32 %v911, %v911
      %v914 = vsel %vm250, %v913, 0.0
      %915 = vadd.xlane.f32.xlu0 %v914
      %v916 = vpop.xlane.xlu0 %915
      %v917 = vmul.f32 %v916, %v260
      %v918 = vadd.f32 %v917, 1e-06
      %v919 = vrsqrt.pop %v918
      %v920 = vmul.f32 %v919, %v918
      %v921 = vmul.f32 %v920, %v919
      %v922 = vmul.f32 0.5, %v921
      %v923 = vsub.f32 1.5, %v922
      %v924 = vmul.f32 %v919, %v923
      %vm925 = vweird.f32 %v918
      %vm926 = vweird.f32 %v919
      %vm927 = vmor %vm925, %vm926
      %v928 = vsel %vm927, %v919, %v924
      %v929 = vmul.f32 %v911, %v928
      %v930 = vperm.slane %v912, 0
      %v931 = vmul.f32 %v929, %v930
      %v932 = vsel %vm250, %v931, 0.0
      %v933 = vrot.slane %v932, 4
      %v934 = vadd.f32 %v932, %v933
      %v935 = vrot.slane %v934, 2
      %v936 = vadd.f32 %v934, %v935
      %v937 = vrot.slane %v936, 1
      %v938 = vadd.f32 %v936, %v937
      %v939 = vrcp.pop 8.0
      %v940 = vmul.f32 8.0, %v939
      %v941 = vsub.f32 1.0, %v940
      %v942 = vmul.f32 %v939, %v941
      %v943 = vadd.f32 %v939, %v942
      %vm944 = vweird.f32 %v939
      %v945 = vsel %vm944, %v939, %v943
      %v946 = vmul.f32 %v938, %v945
      %v947 = vld [vmem:[%s4 + $0x5] sm:$0x1]
      %v948 = vmul.f32 %v946, %v947
      %vm949 = vcmask 253952
      %v950 = vsel %vm949, %v948, 0.0
      %951 = vadd.xlane.f32.xlu0 %v950
      %v952 = vpop.xlane.xlu0 %951
      %v953 = vld [vmem:[%s4 + $0x6] sm:$0x1]
      %v954 = vadd.f32 %v952, %v953
      %v955 = vtanh.pop %v954
      %vm956 = vcmask 0
      %957 = vst.msk [vmem:[%s237] sm:$0x1] %vm956, %v955
      %p958 = scmp.lt.s32.totalorder %s16, 1
      %s959 = scalar_select %p958, %s16, 1
      %s960 = scalar_lea.vmem %s5, %s959
      // Predicated region
      $region41: #{critic_forward.1} parent=39 // pred_check
        %p961 = pneg %p149
      $region42: #{critic_forward.1} parent=39 // pred_check_branch
        %963 = sbr.rel (%p961) target = $region44
      $region43: #{critic_forward.1} parent=39 // pred_region
        _
      $region44: #{critic_forward.1} parent=39 // pred_fallthru
        _
    $region40: #{critic_forward.1} parent=5 // pred_fallthru
      _
    %p964 = scmp.le.s32.totalorder 2, %s11
    // Predicated region
    $region45: #{critic_forward.1} parent=5 // pred_check
      %p965 = pneg %p964
    $region46: #{critic_forward.1} parent=5 // pred_check_branch
      %967 = sbr.rel (%p965) target = $region48
    $region47: #{critic_forward.1} parent=5 // pred_region
      %s968 = ssub.s32 %s11, 2
      // Predicated region
      $region49: #{critic_forward.1} parent=47 // pred_check
        %p969 = pneg %p155
      $region50: #{critic_forward.1} parent=47 // pred_check_branch
        %971 = sbr.rel (%p969) target = $region52
      $region51: #{critic_forward.1} parent=47 // pred_region
        %p972 = scmp.lt.s32.totalorder %s17, 1
        %s973 = scalar_select %p972, %s17, 1
        %s974 = scalar_lea.vmem %s5, %s973
      $region52: #{critic_forward.1} parent=47 // pred_fallthru
        _
    $region48: #{critic_forward.1} parent=5 // pred_fallthru
      _
  $region6: #{critic_forward.1} parent=0 // loop_footer
    %s15 = sadd.s32 1, %s11
  $region7: #{critic_forward.1} parent=0 // loop_footer_branch
    %10 = sbr.rel target = $region3
  $region8: #{critic_forward.1} parent=0 // loop_exit
    _

</llo_original>
